<compile_context>
chip_gen: v5e
topology: v5e:2x2
jax: 0.10.0
libtpu: 0.0.40
codegen_flags: <defaults>
</compile_context>

<pallas_src>
import functools

import jax
import jax.numpy as jnp
from jax.experimental import pallas as pl
from jax.experimental.pallas import tpu as pltpu


def _ce_mse_kernel(x_ref, y_ref, ce_ref, mse_ref, *, n_total, tile_n,
                   tiles_per_part, fold_rows, use_mxu_reduce):
    p = pl.program_id(0)
    t = pl.program_id(1)

    # Output blocks are resident across the t (reduction) axis -> zero once.
    @pl.when(t == 0)
    def _init():
        ce_ref[...] = jnp.zeros_like(ce_ref)
        mse_ref[...] = jnp.zeros_like(mse_ref)

    x = x_ref[...].astype(jnp.float32)
    y = y_ref[...].astype(jnp.float32)
    c = x.shape[-1]

    if use_mxu_reduce:
        # Lane reduction on the otherwise-idle MXU: one matmul push per LHS
        # vreg replaces ~7 XLU rotate+adds.  All matmul dims are 128-aligned.
        ones = jnp.ones((c, 128), dtype=jnp.float32)

        def rowsum(a):
            s = jnp.dot(a, ones, precision=jax.lax.Precision.HIGHEST,
                        preferred_element_type=jnp.float32)
            return s[:, :1]
    else:
        def rowsum(a):
            return jnp.sum(a, axis=-1, keepdims=True)

    # Soft-target CE without materializing log-probs:
    #   -sum_c y*logp = lse * sum_c(y) - sum_c(y * (x - m))
    m = jnp.max(x, axis=-1, keepdims=True)           # row max (stability)
    z = x - m
    lse = jnp.log(rowsum(jnp.exp(z)))                # (tile_n, 1)
    ce_row = lse * rowsum(y) - rowsum(y * z)         # (tile_n, 1)

    d = x - y
    mse_row = rowsum(d * d)                          # (tile_n, 1)

    # Mask rows past the logical batch size (partial last tile and redundant
    # clamped tiles).  Uses the *logical* (unclamped) row index; jnp.where is a
    # true select, so NaN/Inf from OOB garbage rows cannot leak through.
    row0 = (p * tiles_per_part + t) * tile_n
    row_ids = row0 + jax.lax.broadcasted_iota(jnp.int32, (tile_n, 1), 0)
    valid = row_ids < n_total
    ce_row = jnp.where(valid, ce_row, 0.0)
    mse_row = jnp.where(valid, mse_row, 0.0)

    # Fold the row partials into the resident output blocks with pure VALU
    # adds; the single cross-sublane reduce happens once, in the wrapper.
    if fold_rows == 8:
        ce_ref[...] += jnp.sum(ce_row.reshape(tile_n // 8, 8, 1), axis=0)
        mse_ref[...] += jnp.sum(mse_row.reshape(tile_n // 8, 8, 1), axis=0)
    else:  # tiny-batch fallback: tile_n == N < 8 (full-dim block)
        ce_ref[...] += jnp.sum(ce_row, axis=0, keepdims=True)
        mse_ref[...] += jnp.sum(mse_row, axis=0, keepdims=True)


def _cores_per_chip():
    # 2 TensorCores only on v7x; on v5e/v6e the grid is a serial loop, so a
    # 2-way split would be pure overhead.
    try:
        kind = jax.devices()[0].device_kind.lower()
    except Exception:
        return 1
    return 2 if ("v7" in kind or "tpu7" in kind) else 1


def _choose_tile_n(n, c, itemsize_x, itemsize_y):
    # Per-row VMEM working-set estimate:
    #   * 2 pipeline buffers per input ........................ 2*(ix+iy)*C
    #   * ~4 live full-width f32 temporaries (z, exp(z),
    #     y*z / d*d, MXU rowsum output / f32 upcasts) .......... 16*C
    #   * ~4 live (rows, 1) f32 row columns (m, lse, ce_row,
    #     mse_row), each padded to a full 128-lane vreg row .... 2048
    per_row = 2 * c * (itemsize_x + itemsize_y) + 16 * c + 2048
    budget = 28 * 1024 * 1024            # estimate target; vmem limit is 48 MiB
    rows = max(8, budget // max(1, per_row))
    pack = max(8, 32 // max(1, min(itemsize_x, itemsize_y)))   # 8 f32 / 16 bf16
    rows = max(pack, (rows // pack) * pack)
    if rows >= n:
        if n % 8 == 0:
            return n                     # one exact tile
        if n > 8:
            return (n // 8) * 8          # multiple of 8; last tile is partial
        return n                         # tiny batch: full-dim block
    return rows


def ce_and_mse(x, y, wt_ce=0.5, tile_n=None):
    """Pallas implementation of CeAndMse.forward(x, y).  Returns a scalar f32."""
    assert x.shape == y.shape and x.ndim == 2, "expect (N, C) logits / soft targets"
    n, c = x.shape
    if tile_n is None:
        tile_n = _choose_tile_n(n, c, jnp.dtype(x.dtype).itemsize,
                                jnp.dtype(y.dtype).itemsize)
    if tile_n % 8 != 0 and tile_n != n:
        raise ValueError("tile_n must be a multiple of 8 (or equal to N)")
    fold_rows = 8 if tile_n % 8 == 0 else 1

    num_tiles = pl.cdiv(n, tile_n)
    num_parts = 2 if (_cores_per_chip() >= 2 and num_tiles >= 2) else 1
    tiles_per_part = pl.cdiv(num_tiles, num_parts)
    needs_clamp = num_parts * tiles_per_part > num_tiles

    def in_index_map(p_idx, t_idx):
        g = p_idx * tiles_per_part + t_idx
        if needs_clamp:                  # only on the 2-core path w/ odd tiles
            g = jnp.minimum(g, num_tiles - 1)
        return (g, 0)

    def out_index_map(p_idx, t_idx):
        return (p_idx, 0)

    use_mxu_reduce = (c % 128 == 0) and (c <= 512)

    kernel = functools.partial(
        _ce_mse_kernel, n_total=n, tile_n=tile_n, tiles_per_part=tiles_per_part,
        fold_rows=fold_rows, use_mxu_reduce=use_mxu_reduce)

    ce_parts, mse_parts = pl.pallas_call(
        kernel,
        out_shape=(
            jax.ShapeDtypeStruct((num_parts * fold_rows, 1), jnp.float32),
            jax.ShapeDtypeStruct((num_parts * fold_rows, 1), jnp.float32),
        ),
        grid_spec=pltpu.PrefetchScalarGridSpec(
            num_scalar_prefetch=0,
            grid=(num_parts, tiles_per_part),
            in_specs=[
                pl.BlockSpec((tile_n, c), in_index_map),
                pl.BlockSpec((tile_n, c), in_index_map),
            ],
            out_specs=(
                pl.BlockSpec((fold_rows, 1), out_index_map),
                pl.BlockSpec((fold_rows, 1), out_index_map),
            ),
        ),
        compiler_params=pltpu.CompilerParams(
            dimension_semantics=("parallel", "arbitrary"),
            vmem_limit_bytes=48 * 1024 * 1024,
        ),
    )(x, y)

    # Combine per-core / per-sublane partial sums; apply all normalization and
    # scaling exactly once (never per tile).
    ce = jnp.sum(ce_parts) / jnp.float32(n)
    mse = jnp.sum(mse_parts) / jnp.float32(n * c)
    return (jnp.float32(wt_ce) * ce / jnp.float32(1000.0)
            + jnp.float32(1.0 - wt_ce) * mse)


def _reference(x, y, wt_ce):
    xf = x.astype(jnp.float32)
    yf = y.astype(jnp.float32)
    logp = jax.nn.log_softmax(xf, axis=-1)
    ce = jnp.mean(-jnp.sum(yf * logp, axis=-1))
    mse = jnp.mean((xf - yf) ** 2)
    return wt_ce * ce / 1000.0 + (1.0 - wt_ce) * mse


if __name__ == "__main__":
    key = jax.random.PRNGKey(0)
    ks = jax.random.split(key, 8)

    # Case 1: small single tile, C not a multiple of 128 (jnp.sum reduction
    # path); targets deliberately not normalized (sum_c y != 1).
    x1 = jax.random.normal(ks[0], (8, 32), dtype=jnp.float32)
    y1 = 2.0 * jax.nn.softmax(jax.random.normal(ks[1], (8, 32)), axis=-1)
    out1 = ce_and_mse(x1, y1, wt_ce=0.5)
    jax.block_until_ready(out1)
    ref1 = _reference(x1, y1, 0.5)
    assert jnp.allclose(out1, ref1, rtol=1e-4, atol=1e-6), (out1, ref1)

    # Case 2: streaming grid with a partial (masked) last tile; MXU rowsum path.
    x2 = jax.random.normal(ks[2], (200, 128), dtype=jnp.float32)
    y2 = jax.nn.softmax(jax.random.normal(ks[3], (200, 128)), axis=-1)
    out2 = ce_and_mse(x2, y2, wt_ce=0.3, tile_n=72)
    jax.block_until_ready(out2)
    ref2 = _reference(x2, y2, 0.3)
    assert jnp.allclose(out2, ref2, rtol=1e-4, atol=1e-6), (out2, ref2)

    # Case 3: bf16 inputs (halves HBM bytes); f32 math inside the kernel.
    x3 = jax.random.normal(ks[4], (24, 128)).astype(jnp.bfloat16)
    y3 = jax.nn.softmax(jax.random.normal(ks[5], (24, 128)), axis=-1).astype(jnp.bfloat16)
    out3 = ce_and_mse(x3, y3, wt_ce=0.5)
    jax.block_until_ready(out3)
    ref3 = _reference(x3, y3, 0.5)
    assert jnp.allclose(out3, ref3, rtol=1e-4, atol=1e-6), (out3, ref3)

    # Case 4: wide class dim (> 512): jnp.sum reduction path, multiple lane
    # vregs per row.
    x4 = jax.random.normal(ks[6], (16, 640), dtype=jnp.float32)
    y4 = jax.nn.softmax(jax.random.normal(ks[7], (16, 640)), axis=-1)
    out4 = ce_and_mse(x4, y4, wt_ce=0.7)
    jax.block_until_ready(out4)
    ref4 = _reference(x4, y4, 0.7)
    assert jnp.allclose(out4, ref4, rtol=1e-4, atol=1e-6), (out4, ref4)

    print("KERNEL_OK")
</pallas_src>

<mosaic_0001>
module attributes {stable_mosaic.version = 11 : i64} {
  func.func @_ce_mse_kernel(%arg0: i32, %arg1: i32, %arg2: memref<8x32xf32, #tpu.memory_space<vmem>>, %arg3: memref<8x32xf32, #tpu.memory_space<vmem>>, %arg4: memref<8x1xf32, #tpu.memory_space<vmem>>, %arg5: memref<8x1xf32, #tpu.memory_space<vmem>>) attributes {dimension_semantics = [#tpu.dimension_semantics<parallel>, #tpu.dimension_semantics<arbitrary>], iteration_bounds = array<i64: 1, 1>, scalar_prefetch = 0 : i64, scratch_operands = 0 : i64, tpu.core_type = #tpu.core_type<tc>, window_params = [{transform_indices = @transform_0, window_bounds = array<i64: 8, 32>}, {transform_indices = @transform_1, window_bounds = array<i64: 8, 32>}, {transform_indices = @transform_2, window_bounds = array<i64: 8, 1>}, {transform_indices = @transform_3, window_bounds = array<i64: 8, 1>}]} {
    %c0_i32 = arith.constant 0 : i32
    %0 = arith.cmpi eq, %arg1, %c0_i32 : i32
    %1 = arith.extui %0 : i1 to i32
    %c0_i32_0 = arith.constant 0 : i32
    %2 = arith.cmpi ne, %1, %c0_i32_0 : i32
    scf.if %2 {
      %cst_21 = arith.constant 0.000000e+00 : f32
      %46 = vector.broadcast %cst_21 : f32 to vector<8x1xf32>
      %c0_22 = arith.constant 0 : index
      %c0_23 = arith.constant 0 : index
      %47 = vector.load %arg4[%c0_22, %c0_23] : memref<8x1xf32, #tpu.memory_space<vmem>>, vector<8x1xf32>
      tpu.vector_store %arg4[%c0_22, %c0_23], %46 {strides = array<i32>} : memref<8x1xf32, #tpu.memory_space<vmem>>, vector<8x1xf32>,
      %cst_24 = arith.constant 0.000000e+00 : f32
      %48 = vector.broadcast %cst_24 : f32 to vector<8x1xf32>
      %c0_25 = arith.constant 0 : index
      %c0_26 = arith.constant 0 : index
      %49 = vector.load %arg5[%c0_25, %c0_26] : memref<8x1xf32, #tpu.memory_space<vmem>>, vector<8x1xf32>
      tpu.vector_store %arg5[%c0_25, %c0_26], %48 {strides = array<i32>} : memref<8x1xf32, #tpu.memory_space<vmem>>, vector<8x1xf32>,
    } else {
    }
    %c0 = arith.constant 0 : index
    %c0_1 = arith.constant 0 : index
    %3 = vector.load %arg2[%c0, %c0_1] : memref<8x32xf32, #tpu.memory_space<vmem>>, vector<8x32xf32>
    %c0_2 = arith.constant 0 : index
    %c0_3 = arith.constant 0 : index
    %4 = vector.load %arg3[%c0_2, %c0_3] : memref<8x32xf32, #tpu.memory_space<vmem>>, vector<8x32xf32>
    %cst = arith.constant dense<0xFF800000> : vector<8xf32>
    %5 = vector.multi_reduction <maximumf>, %3, %cst [1] : vector<8x32xf32> to vector<8xf32>
    %6 = vector.shape_cast %5 : vector<8xf32> to vector<8x1xf32>
    %7 = vector.broadcast %6 : vector<8x1xf32> to vector<8x32xf32>
    %8 = arith.subf %3, %7 : vector<8x32xf32>
    %9 = math.exp %8 : vector<8x32xf32>
    %cst_4 = arith.constant dense<0.000000e+00> : vector<8xf32>
    %10 = vector.multi_reduction <add>, %9, %cst_4 [1] : vector<8x32xf32> to vector<8xf32>
    %11 = vector.shape_cast %10 : vector<8xf32> to vector<8x1xf32>
    %12 = math.log %11 : vector<8x1xf32>
    %cst_5 = arith.constant dense<0.000000e+00> : vector<8xf32>
    %13 = vector.multi_reduction <add>, %4, %cst_5 [1] : vector<8x32xf32> to vector<8xf32>
    %14 = vector.shape_cast %13 : vector<8xf32> to vector<8x1xf32>
    %15 = arith.mulf %12, %14 : vector<8x1xf32>
    %16 = arith.mulf %4, %8 : vector<8x32xf32>
    %cst_6 = arith.constant dense<0.000000e+00> : vector<8xf32>
    %17 = vector.multi_reduction <add>, %16, %cst_6 [1] : vector<8x32xf32> to vector<8xf32>
    %18 = vector.shape_cast %17 : vector<8xf32> to vector<8x1xf32>
    %19 = arith.subf %15, %18 : vector<8x1xf32>
    %20 = arith.subf %3, %4 : vector<8x32xf32>
    %21 = arith.mulf %20, %20 : vector<8x32xf32>
    %cst_7 = arith.constant dense<0.000000e+00> : vector<8xf32>
    %22 = vector.multi_reduction <add>, %21, %cst_7 [1] : vector<8x32xf32> to vector<8xf32>
    %23 = vector.shape_cast %22 : vector<8xf32> to vector<8x1xf32>
    %c1_i32 = arith.constant 1 : i32
    %24 = arith.muli %arg0, %c1_i32 : i32
    %25 = arith.addi %24, %arg1 : i32
    %c8_i32 = arith.constant 8 : i32
    %26 = arith.muli %25, %c8_i32 : i32
    %27 = tpu.iota {dimensions = array<i32: 0>} : vector<8x1xi32>
    %28 = vector.broadcast %26 : i32 to vector<8x1xi32>
    %29 = arith.addi %28, %27 : vector<8x1xi32>
    %c8_i32_8 = arith.constant 8 : i32
    %30 = vector.broadcast %c8_i32_8 : i32 to vector<8x1xi32>
    %31 = arith.cmpi slt, %29, %30 : vector<8x1xi32>
    %cst_9 = arith.constant 0.000000e+00 : f32
    %32 = vector.broadcast %cst_9 : f32 to vector<8x1xf32>
    %33 = arith.select %31, %19, %32 : vector<8x1xi1>, vector<8x1xf32>
    %cst_10 = arith.constant 0.000000e+00 : f32
    %34 = vector.broadcast %cst_10 : f32 to vector<8x1xf32>
    %35 = arith.select %31, %23, %34 : vector<8x1xi1>, vector<8x1xf32>
    %c0_11 = arith.constant 0 : index
    %c0_12 = arith.constant 0 : index
    %36 = vector.load %arg4[%c0_11, %c0_12] : memref<8x1xf32, #tpu.memory_space<vmem>>, vector<8x1xf32>
    %37 = vector.shape_cast %33 : vector<8x1xf32> to vector<1x8x1xf32>
    %cst_13 = arith.constant dense<0.000000e+00> : vector<8x1xf32>
    %38 = vector.multi_reduction <add>, %37, %cst_13 [0] : vector<1x8x1xf32> to vector<8x1xf32>
    %39 = arith.addf %36, %38 : vector<8x1xf32>
    %c0_14 = arith.constant 0 : index
    %c0_15 = arith.constant 0 : index
    %40 = vector.load %arg4[%c0_14, %c0_15] : memref<8x1xf32, #tpu.memory_space<vmem>>, vector<8x1xf32>
    tpu.vector_store %arg4[%c0_14, %c0_15], %39 {strides = array<i32>} : memref<8x1xf32, #tpu.memory_space<vmem>>, vector<8x1xf32>,
    %c0_16 = arith.constant 0 : index
    %c0_17 = arith.constant 0 : index
    %41 = vector.load %arg5[%c0_16, %c0_17] : memref<8x1xf32, #tpu.memory_space<vmem>>, vector<8x1xf32>
    %42 = vector.shape_cast %35 : vector<8x1xf32> to vector<1x8x1xf32>
    %cst_18 = arith.constant dense<0.000000e+00> : vector<8x1xf32>
    %43 = vector.multi_reduction <add>, %42, %cst_18 [0] : vector<1x8x1xf32> to vector<8x1xf32>
    %44 = arith.addf %41, %43 : vector<8x1xf32>
    %c0_19 = arith.constant 0 : index
    %c0_20 = arith.constant 0 : index
    %45 = vector.load %arg5[%c0_19, %c0_20] : memref<8x1xf32, #tpu.memory_space<vmem>>, vector<8x1xf32>
    tpu.vector_store %arg5[%c0_19, %c0_20], %44 {strides = array<i32>} : memref<8x1xf32, #tpu.memory_space<vmem>>, vector<8x1xf32>,
    return
  }
  func.func @transform_0(%arg0: i32, %arg1: i32) -> (i32, i32) {
    %c1_i32 = arith.constant 1 : i32
    %0 = arith.muli %arg0, %c1_i32 : i32
    %1 = arith.addi %0, %arg1 : i32
    %c0_i32 = arith.constant 0 : i32
    %c0_i32_0 = arith.constant 0 : i32
    return %1, %c0_i32 : i32, i32
  }
  func.func @transform_1(%arg0: i32, %arg1: i32) -> (i32, i32) {
    %c1_i32 = arith.constant 1 : i32
    %0 = arith.muli %arg0, %c1_i32 : i32
    %1 = arith.addi %0, %arg1 : i32
    %c0_i32 = arith.constant 0 : i32
    %c0_i32_0 = arith.constant 0 : i32
    return %1, %c0_i32 : i32, i32
  }
  func.func @transform_2(%arg0: i32, %arg1: i32) -> (i32, i32) {
    %c0_i32 = arith.constant 0 : i32
    %c0_i32_0 = arith.constant 0 : i32
    return %arg0, %c0_i32 : i32, i32
  }
  func.func @transform_3(%arg0: i32, %arg1: i32) -> (i32, i32) {
    %c0_i32 = arith.constant 0 : i32
    %c0_i32_0 = arith.constant 0 : i32
    return %arg0, %c0_i32 : i32, i32
  }
}

</mosaic_0001>

<llo_original>
// kernel: tpu_custom_call.1
$region0: #{tpu_custom_call.1}
  #allocation0 [shape = 'u32[]', space=smem, size = 0x4, offset = 0x4, fixed_abs, tag = 'smem constant byte address 0x4 - core index']
  #allocation1 [shape = 'u32[72,128]{1,0:T(1,128)}', space=vmem, size = 0x9000, scoped, tag = 'internal scratch']
  %s0 = inlined_call_operand.hbm [shape: f32[8,32], index: 0, kind: input, shape index: {}]
  %s1 = inlined_call_operand.hbm [shape: f32[8,32], index: 1, kind: input, shape index: {}]
  %s2 = inlined_call_operand.vmem [shape: f32[8,1], index: 2, kind: output, shape index: {0}]
  %s3 = inlined_call_operand.vmem [shape: f32[8,1], index: 3, kind: output, shape index: {1}]
  %4 = xla_tuple %s2, %s3
  %s5 = sld [smem:[#allocation0]]
  $region38: #{tpu_custom_call.1} parent=0
    _
  %s7 = ssub.s32 1, %s5
  %s8 = scalar_select 0, %s7, %s5
  $region1: #{tpu_custom_call.1} parent=0
    #allocation2 [shape = 'u8[4096]{0}', space=vmem, size = 0x1000, scoped, tag = 'input window, operand 0, single buffered']
    #allocation3 [shape = 's32[1]{0}', space=sflag, size = 0x4, scoped, tag = 'scoped memory for tpu_custom_call.1']
    #allocation4 [shape = 'u8[4096]{0}', space=vmem, size = 0x1000, scoped, tag = 'input window, operand 1, single buffered']
    #allocation5 [shape = 's32[1]{0}', space=sflag, size = 0x4, scoped, tag = 'scoped memory for tpu_custom_call.1']
    %9 = vsyncpa [#allocation3], 0
    %10 = vsyncpa [#allocation5], 0
    // Predicated region
    $region2: #{tpu_custom_call.1} parent=1 // pred_check
      _
    $region3: #{tpu_custom_call.1} parent=1 // pred_check_branch
      %12 = sbr.rel (0) target = $region5
    $region4: #{tpu_custom_call.1} parent=1 // pred_region
      %s13 = sadd.s32 0, 0
      %15 = vsyncadd [#allocation3], 0
      %s16 = smul.addr %s13, 8
      %s17 = scalar_lea.hbm %s0, %s16
      %s19 = sshll.u32 %s17, 4
      %s20 = int_to_ptr.hbm [resolvable:$true] %s19
      %s21 = sshll.u32 [#allocation2], 4
      %s22 = int_to_ptr.vmem [resolvable:$true] %s21
      %24 = dma.hbm_to_vmem [thread:$0]  %s20, 128, %s22, [#allocation3]
    $region5: #{tpu_custom_call.1} parent=1 // pred_fallthru
      _
    // Predicated region
    $region6: #{tpu_custom_call.1} parent=1 // pred_check
      _
    $region7: #{tpu_custom_call.1} parent=1 // pred_check_branch
      %26 = sbr.rel (0) target = $region9
    $region8: #{tpu_custom_call.1} parent=1 // pred_region
      %s27 = sadd.s32 0, 0
      %29 = vsyncadd [#allocation5], 0
      %s30 = smul.addr %s27, 8
      %s31 = scalar_lea.hbm %s1, %s30
      %s33 = sshll.u32 %s31, 4
      %s34 = int_to_ptr.hbm [resolvable:$true] %s33
      %s35 = sshll.u32 [#allocation4], 4
      %s36 = int_to_ptr.vmem [resolvable:$true] %s35
      %38 = dma.hbm_to_vmem [thread:$0]  %s34, 128, %s36, [#allocation5]
    $region9: #{tpu_custom_call.1} parent=1 // pred_fallthru
      _
    // Predicated region
    $region10: #{tpu_custom_call.1} parent=1 // pred_check
      _
    $region11: #{tpu_custom_call.1} parent=1 // pred_check_branch
      %40 = sbr.rel (0) target = $region13
    $region12: #{tpu_custom_call.1} parent=1 // pred_region
      %42 = dma.done [#allocation3], 128
    $region13: #{tpu_custom_call.1} parent=1 // pred_fallthru
      _
    // Predicated region
    $region14: #{tpu_custom_call.1} parent=1 // pred_check
      _
    $region15: #{tpu_custom_call.1} parent=1 // pred_check_branch
      %44 = sbr.rel (0) target = $region17
    $region16: #{tpu_custom_call.1} parent=1 // pred_region
      %46 = dma.done [#allocation5], 128
    $region17: #{tpu_custom_call.1} parent=1 // pred_fallthru
      _
    %s47 = sadd.s32 0, 0
    %s48 = sadd.s32 0, 0
    %p49 = scmp.eq.s32.totalorder 0, 0
    // Predicated region
    $region18: #{tpu_custom_call.1} parent=1 // pred_check
      %p50 = pneg %p49
    $region19: #{tpu_custom_call.1} parent=1 // pred_check_branch
      %52 = sbr.rel (%p50) target = $region21
    $region20: #{tpu_custom_call.1} parent=1 // pred_region
      %vm53 = vcmask 7168
      %54 = vst.msk [vmem:[%s2] sm:$0xff] %vm53, 0.0
      %55 = vst.msk [vmem:[%s3] sm:$0xff] %vm53, 0.0
    $region21: #{tpu_custom_call.1} parent=1 // pred_fallthru
      _
    %v56 = vld [vmem:[#allocation2] sm:$0xff]
    %v57 = vld [vmem:[#allocation4] sm:$0xff]
    %vm58 = vcmask 261120
    %v59 = vsel %vm58, %v56, -inf
    %60 = vmax.xlane.f32.xlu0 %v59
    %v61 = vpop.xlane.xlu0 %60
    %v62 = vsub.f32 %v56, %v61
    %v63 = vmul.f32 %v62, 1.442695
    %v64 = vpow.pop %v63
    %v65 = vsel %vm58, %v64, 0.0
    %66 = vadd.xlane.f32.xlu0 %v65
    %v67 = vpop.xlane.xlu0 %66
    %v68 = vlog2.pop %v67
    %v69 = vmul.f32 %v68, 0.6931472
    %v70 = vsel %vm58, %v57, 0.0
    %71 = vadd.xlane.f32.xlu0 %v70
    %v72 = vpop.xlane.xlu0 %71
    %v73 = vmul.f32 %v69, %v72
    %v74 = vmul.f32 %v57, %v62
    %v75 = vsel %vm58, %v74, 0.0
    %76 = vadd.xlane.f32.xlu0 %v75
    %v77 = vpop.xlane.xlu0 %76
    %v78 = vsub.f32 %v73, %v77
    %v79 = vsub.f32 %v56, %v57
    %v80 = vmul.f32 %v79, %v79
    %v81 = vsel %vm58, %v80, 0.0
    %82 = vadd.xlane.f32.xlu0 %v81
    %v83 = vpop.xlane.xlu0 %82
    %s84 = sadd.s32 0, 0
    %s85 = smul.u32 %s84, 8
    %v86 = vlaneseq
    %v87 = vshrl.u32 %v86, 7
    %v88 = vstv %s85
    %v89 = vadd.s32 %v88, %v87
    %vm90 = vcmp.lt.s32.totalorder %v89, 8
    %v91 = vsel %vm90, %v78, 0.0
    %v92 = vsel %vm90, %v83, 0.0
    %v93 = vld [vmem:[%s2] sm:$0xff]
    %v94 = vadd.f32 %v91, 0.0
    %v95 = vadd.f32 %v93, %v94
    %vm96 = vcmask 7168
    %97 = vst.msk [vmem:[%s2] sm:$0xff] %vm96, %v95
    %v98 = vld [vmem:[%s3] sm:$0xff]
    %v99 = vadd.f32 %v92, 0.0
    %v100 = vadd.f32 %v98, %v99
    %101 = vst.msk [vmem:[%s3] sm:$0xff] %vm96, %v100
    // Predicated region
    $region22: #{tpu_custom_call.1} parent=1 // pred_check
      _
    $region23: #{tpu_custom_call.1} parent=1 // pred_check_branch
      %103 = sbr.rel (0) target = $region25
    $region24: #{tpu_custom_call.1} parent=1 // pred_region
      _
    $region25: #{tpu_custom_call.1} parent=1 // pred_fallthru
      _
    // Predicated region
    $region26: #{tpu_custom_call.1} parent=1 // pred_check
      _
    $region27: #{tpu_custom_call.1} parent=1 // pred_check_branch
      %105 = sbr.rel (0) target = $region29
    $region28: #{tpu_custom_call.1} parent=1 // pred_region
      _
    $region29: #{tpu_custom_call.1} parent=1 // pred_fallthru
      _
    // Predicated region
    $region30: #{tpu_custom_call.1} parent=1 // pred_check
      _
    $region31: #{tpu_custom_call.1} parent=1 // pred_check_branch
      %107 = sbr.rel (0) target = $region33
    $region32: #{tpu_custom_call.1} parent=1 // pred_region
      _
    $region33: #{tpu_custom_call.1} parent=1 // pred_fallthru
      _
    // Predicated region
    $region34: #{tpu_custom_call.1} parent=1 // pred_check
      _
    $region35: #{tpu_custom_call.1} parent=1 // pred_check_branch
      %109 = sbr.rel (0) target = $region37
    $region36: #{tpu_custom_call.1} parent=1 // pred_region
      _
    $region37: #{tpu_custom_call.1} parent=1 // pred_fallthru
      _
    %110 = vsyncpa [#allocation3], 1
    %111 = vsyncpa [#allocation5], 1

</llo_original>
